<compile_context>
chip_gen: v7x
topology: tpu7x:2x2x1
jax: 0.10.0
libtpu: 0.0.40
codegen_flags: <defaults>
</compile_context>

<pallas_src>
import jax
import jax.numpy as jnp
from jax.experimental import pallas as pl
from jax.experimental.pallas import tpu as pltpu


def _sigmoid(x):
    # exp -> EUP, approx reciprocal -> EUP; keeps the VALU slot free.
    return pl.reciprocal(1.0 + jnp.exp(-x), approx=True)


# ----------------------------------------------------------------------------
# 1) LSTM input projection, hoisted off the serial recurrence:
#    x_proj = x_r @ W_ih^T + (b_ih + b_hh), computed once for all B sequence
#    steps as a single lane-dense matmul (kept off the critical path).
# ----------------------------------------------------------------------------
def _lstm_inproj_kernel(x_ref, w_ref, b_ref, o_ref):
    o_ref[...] = (jnp.dot(x_ref[...].astype(jnp.bfloat16), w_ref[...],
                          preferred_element_type=jnp.float32)
                  + b_ref[...])


def lstm_input_proj(x2d, wih_t_bf16, bias):
    M = x2d.shape[0]
    four_h = wih_t_bf16.shape[1]
    return pl.pallas_call(
        _lstm_inproj_kernel,
        out_shape=jax.ShapeDtypeStruct((M, four_h), jnp.float32),
    )(x2d, wih_t_bf16, bias)


# ----------------------------------------------------------------------------
# 2) LSTM recurrence: serial grid over the sequence axis (== original batch B).
#    Per step only h @ W_hh runs on the MXU; only the last "batch" row
#    (index n_time-1) is written out -> output is (B, 1, H), lane-dense.
# ----------------------------------------------------------------------------
def _lstm_rec_kernel(xproj_ref, whh_ref, out_ref, h_scr, c_scr):
    @pl.when(pl.program_id(0) == 0)
    def _():
        h_scr[...] = jnp.zeros_like(h_scr)
        c_scr[...] = jnp.zeros_like(c_scr)

    T = h_scr.shape[0]
    H = h_scr.shape[-1]
    gates = xproj_ref[0] + jnp.dot(h_scr[...].astype(jnp.bfloat16), whh_ref[...],
                                   preferred_element_type=jnp.float32)  # (T, 4H)
    i = _sigmoid(gates[:, 0 * H:1 * H])
    f = _sigmoid(gates[:, 1 * H:2 * H])
    g = jnp.tanh(gates[:, 2 * H:3 * H])
    o = _sigmoid(gates[:, 3 * H:4 * H])
    c_new = f * c_scr[...] + i * g
    h_new = o * jnp.tanh(c_new)
    c_scr[...] = c_new
    h_scr[...] = h_new
    out_ref[0] = h_new[T - 1:T, :]          # only x1[:, -1, :] is needed downstream


def lstm_recurrence(x_proj, whh_t_bf16, n_time, hidden):
    B = x_proj.shape[0]
    return pl.pallas_call(
        _lstm_rec_kernel,
        out_shape=jax.ShapeDtypeStruct((B, 1, hidden), jnp.float32),
        grid_spec=pltpu.PrefetchScalarGridSpec(
            num_scalar_prefetch=0,
            grid=(B,),
            in_specs=[
                pl.BlockSpec((1, n_time, 4 * hidden), lambda b: (b, 0, 0)),
                pl.BlockSpec((hidden, 4 * hidden), lambda b: (0, 0)),
            ],
            out_specs=pl.BlockSpec((1, 1, hidden), lambda b: (b, 0, 0)),
            scratch_shapes=[pltpu.VMEM((n_time, hidden), jnp.float32),
                            pltpu.VMEM((n_time, hidden), jnp.float32)],
        ),
        compiler_params=pltpu.CompilerParams(
            dimension_semantics=("arbitrary",),     # stateful across grid steps
            vmem_limit_bytes=64 * 1024 * 1024),
    )(x_proj, whh_t_bf16)


# ----------------------------------------------------------------------------
# 3) Fused conv branch + FC + log_softmax (one pallas_call, grid over batch).
#    Lane-dense (Lout, Cout) conv via im2col single matmuls, SE as row-vector
#    GEMVs, BN folded to scale/shift, bf16 operands with f32 accumulation.
# ----------------------------------------------------------------------------
def _fused_conv_fc_kernel(p1_ref, x1_ref,
                          w1_ref, sc1_ref, sh1_ref, se1a_ref, se1b_ref,
                          w2_ref, sc2_ref, sh2_ref, se2a_ref, se2b_ref,
                          w3_ref, sc3_ref, sh3_ref,
                          fcw_ref, fcb_ref, o_ref):

    def matmul_bn_relu(patches, w_ref, scale_ref, shift_ref):
        # patches: (Lout, K*Cin)  @  w: (K*Cin, Cout)  -> (Lout, Cout) lane-dense
        acc = jnp.dot(patches.astype(jnp.bfloat16), w_ref[...],
                      preferred_element_type=jnp.float32)
        return jnp.maximum(acc * scale_ref[...] + shift_ref[...], 0.0)

    def im2col(y, k_taps):
        # y: (Lin, C) with C a multiple of 128 -> lane-aligned concat chunks.
        lout = y.shape[0] - k_taps + 1
        return jnp.concatenate([y[k:k + lout, :] for k in range(k_taps)], axis=1)

    def se(y, w1_ref, w2_ref):
        s = jnp.mean(y, axis=0, keepdims=True)                       # (1, C)
        z = jnp.maximum(jnp.dot(s.astype(jnp.bfloat16), w1_ref[...],
                                preferred_element_type=jnp.float32), 0.0)  # (1, Cr)
        g = _sigmoid(jnp.dot(z.astype(jnp.bfloat16), w2_ref[...],
                             preferred_element_type=jnp.float32))    # (1, C)
        return y * g                                                 # broadcast gate

    # conv1 (+BN+ReLU) + SE1 : im2col patches built wrapper-side (Cin=4 unaligned)
    y1 = se(matmul_bn_relu(p1_ref[0], w1_ref, sc1_ref, sh1_ref),
            se1a_ref, se1b_ref)                                      # (L1, C1)

    # conv2 (+BN+ReLU) + SE2
    k2 = w2_ref.shape[0] // y1.shape[1]
    y2 = se(matmul_bn_relu(im2col(y1, k2), w2_ref, sc2_ref, sh2_ref),
            se2a_ref, se2b_ref)                                      # (L2, C2)

    # conv3 (+BN+ReLU) + temporal mean
    k3 = w3_ref.shape[0] // y2.shape[1]
    y3 = matmul_bn_relu(im2col(y2, k3), w3_ref, sc3_ref, sh3_ref)    # (L3, C3)
    x2 = jnp.mean(y3, axis=0, keepdims=True)                         # (1, C3)

    # concat with LSTM feature, FC, log_softmax
    x_all = jnp.concatenate([x1_ref[0], x2], axis=1)                 # (1, H + C3)
    logits = (jnp.dot(x_all.astype(jnp.bfloat16), fcw_ref[...],
                      preferred_element_type=jnp.float32) + fcb_ref[...])
    m = jnp.max(logits, axis=-1, keepdims=True)
    lse = jnp.log(jnp.sum(jnp.exp(logits - m), axis=-1, keepdims=True)) + m
    o_ref[0] = (logits - lse).astype(o_ref.dtype)


def _fold_bn(conv_b, bn):
    gamma, beta, mean, var, eps = bn
    inv = gamma / jnp.sqrt(var + eps)
    scale = inv.reshape(1, -1).astype(jnp.float32)                    # (1, Cout)
    shift = (beta + (conv_b - mean) * inv).reshape(1, -1).astype(jnp.float32)
    return scale, shift


def _im2col_weight(w):
    # (Cout, Cin, K) -> (K*Cin, Cout), column order k*Cin + ci to match
    # concat([x[k:k+Lout, :] for k in range(K)], axis=-1) patches.
    cout, cin, k = w.shape
    return jnp.transpose(w, (2, 1, 0)).reshape(k * cin, cout).astype(jnp.bfloat16)


def fused_conv_fc(x_r, x1, p):
    B, n_time, F = x_r.shape
    H = x1.shape[-1]
    num_classes = p['fc_w'].shape[0]

    # conv1 im2col patches built in the wrapper (tiny; avoids unaligned lane
    # concat in-kernel).  Consumes x_r directly -- no (0,2,1) transpose needed.
    K1 = p['c1_w'].shape[2]
    L1 = n_time - K1 + 1
    patches1 = jnp.concatenate([x_r[:, k:k + L1, :] for k in range(K1)], axis=2)

    w1 = _im2col_weight(p['c1_w']); sc1, sh1 = _fold_bn(p['c1_b'], p['bn1'])
    w2 = _im2col_weight(p['c2_w']); sc2, sh2 = _fold_bn(p['c2_b'], p['bn2'])
    w3 = _im2col_weight(p['c3_w']); sc3, sh3 = _fold_bn(p['c3_b'], p['bn3'])
    se1a = p['se1_w1'].T.astype(jnp.bfloat16)      # (C1, C1//r)
    se1b = p['se1_w2'].T.astype(jnp.bfloat16)      # (C1//r, C1)
    se2a = p['se2_w1'].T.astype(jnp.bfloat16)      # (C2, C2//r)
    se2b = p['se2_w2'].T.astype(jnp.bfloat16)      # (C2//r, C2)
    fcw = p['fc_w'].T.astype(jnp.bfloat16)         # (H + C3, nc)
    fcb = p['fc_b'].reshape(1, -1).astype(jnp.float32)

    def const2d(a):
        return pl.BlockSpec(a.shape, lambda b: (0, 0))

    out = pl.pallas_call(
        _fused_conv_fc_kernel,
        out_shape=jax.ShapeDtypeStruct((B, 1, num_classes), jnp.float32),
        grid_spec=pltpu.PrefetchScalarGridSpec(
            num_scalar_prefetch=0,
            grid=(B,),
            in_specs=[
                pl.BlockSpec((1, L1, K1 * F), lambda b: (b, 0, 0)),
                pl.BlockSpec((1, 1, H), lambda b: (b, 0, 0)),
                const2d(w1), const2d(sc1), const2d(sh1), const2d(se1a), const2d(se1b),
                const2d(w2), const2d(sc2), const2d(sh2), const2d(se2a), const2d(se2b),
                const2d(w3), const2d(sc3), const2d(sh3),
                const2d(fcw), const2d(fcb),
            ],
            out_specs=pl.BlockSpec((1, 1, num_classes), lambda b: (b, 0, 0)),
        ),
        compiler_params=pltpu.CompilerParams(
            dimension_semantics=("parallel",),
            vmem_limit_bytes=64 * 1024 * 1024),
    )(patches1, x1, w1, sc1, sh1, se1a, se1b, w2, sc2, sh2, se2a, se2b,
      w3, sc3, sh3, fcw, fcb)
    return out[:, 0, :]                                              # (B, nc)


# ----------------------------------------------------------------------------
# Parameter init (deterministic, shapes from the PyTorch __init__) and forward.
# ----------------------------------------------------------------------------
def init_params(key, num_classes, n_features,
                n_lstm_out=128, conv1=128, conv2=256, conv3=128, reduction=16):
    ks = jax.random.split(key, 16)

    def nrm(k, shape, s=0.1):
        return jax.random.normal(k, shape, jnp.float32) * s

    H = n_lstm_out
    p = {}
    p['lstm_wih'] = nrm(ks[0], (4 * H, n_features))
    p['lstm_whh'] = nrm(ks[1], (4 * H, H), 0.05)
    p['lstm_bih'] = nrm(ks[2], (4 * H,))
    p['lstm_bhh'] = nrm(ks[3], (4 * H,))
    p['c1_w'] = nrm(ks[4], (conv1, n_features, 8))
    p['c1_b'] = nrm(ks[5], (conv1,))
    p['c2_w'] = nrm(ks[6], (conv2, conv1, 5), 0.05)
    p['c2_b'] = nrm(ks[7], (conv2,))
    p['c3_w'] = nrm(ks[8], (conv3, conv2, 3), 0.05)
    p['c3_b'] = nrm(ks[9], (conv3,))
    for i, c in ((1, conv1), (2, conv2), (3, conv3)):
        p[f'bn{i}'] = (jnp.ones((c,), jnp.float32), jnp.zeros((c,), jnp.float32),
                       jnp.zeros((c,), jnp.float32), jnp.ones((c,), jnp.float32), 1e-5)
    p['se1_w1'] = nrm(ks[10], (conv1 // reduction, conv1))
    p['se1_w2'] = nrm(ks[11], (conv1, conv1 // reduction))
    p['se2_w1'] = nrm(ks[12], (conv2 // reduction, conv2))
    p['se2_w2'] = nrm(ks[13], (conv2, conv2 // reduction))
    p['fc_w'] = nrm(ks[14], (num_classes, conv3 + H))
    p['fc_b'] = nrm(ks[15], (num_classes,))
    return p


def network_forward(p, x, n_time, n_features, n_lstm_out=128):
    B = x.shape[0]
    H = n_lstm_out

    # exact reproduction of the torch flat reshape (NOT a transpose)
    x_r = x.reshape(B, n_time, n_features)

    # ---- LSTM branch (seq = B, batch = n_time, matching the reference h0/c0) ----
    wih_t = p['lstm_wih'].T.astype(jnp.bfloat16)           # (F, 4H)
    whh_t = p['lstm_whh'].T.astype(jnp.bfloat16)           # (H, 4H)
    bias = (p['lstm_bih'] + p['lstm_bhh']).reshape(1, 4 * H).astype(jnp.float32)
    x_proj = lstm_input_proj(x_r.reshape(B * n_time, n_features), wih_t, bias)
    x_proj = x_proj.reshape(B, n_time, 4 * H)
    x1 = lstm_recurrence(x_proj, whh_t, n_time, H)         # (B, 1, H)

    # ---- Conv branch + FC + log_softmax, fully fused (one pallas_call) ----
    # TODO(synk): BatchNorm uses running stats (eval mode); training-mode batch
    # statistics and Dropout masks are not implemented.
    return fused_conv_fc(x_r, x1, p)                       # (B, num_classes)


if __name__ == "__main__":
    B, N_FEATURES, N_TIME, NUM_CLASSES = 2, 4, 16, 5
    key = jax.random.PRNGKey(0)
    kx, kp = jax.random.split(key)

    # input in PyTorch layout (B, N_Features, N_time)
    x = jax.random.normal(kx, (B, N_FEATURES, N_TIME), jnp.float32)
    params = init_params(kp, NUM_CLASSES, N_FEATURES)

    out = network_forward(params, x, N_TIME, N_FEATURES)
    out = jax.block_until_ready(out)
    assert out.shape == (B, NUM_CLASSES)
    assert bool(jnp.all(jnp.isfinite(out)))
    # log_softmax rows should exponentiate-sum to ~1
    assert bool(jnp.all(jnp.abs(jnp.sum(jnp.exp(out), axis=1) - 1.0) < 1e-4))
    print("KERNEL_OK")
</pallas_src>

<mosaic_0001>
module attributes {stable_mosaic.version = 11 : i64} {
  func.func @_lstm_inproj_kernel(%arg0: memref<32x4xf32, #tpu.memory_space<vmem>>, %arg1: memref<4x512xbf16, #tpu.memory_space<vmem>>, %arg2: memref<1x512xf32, #tpu.memory_space<vmem>>, %arg3: memref<32x512xf32, #tpu.memory_space<vmem>>) attributes {dimension_semantics = [], scalar_prefetch = 0 : i64, scratch_operands = 0 : i64, tpu.core_type = #tpu.core_type<tc>} {
    %c0 = arith.constant 0 : index
    %c0_0 = arith.constant 0 : index
    %0 = vector.load %arg0[%c0, %c0_0] : memref<32x4xf32, #tpu.memory_space<vmem>>, vector<32x4xf32>
    %1 = arith.truncf %0 : vector<32x4xf32> to vector<32x4xbf16>
    %c0_1 = arith.constant 0 : index
    %c0_2 = arith.constant 0 : index
    %2 = vector.load %arg1[%c0_1, %c0_2] : memref<4x512xbf16, #tpu.memory_space<vmem>>, vector<4x512xbf16>
    %cst = arith.constant dense<0.000000e+00> : vector<32x512xf32>
    %3 = tpu.matmul %1, %2, %cst {dimension_numbers = #tpu.dot_dimension_numbers<[1], [0], [0], [1], [0, 0, 1, 1], [], []>} : vector<32x4xbf16>, vector<4x512xbf16>, vector<32x512xf32> -> vector<32x512xf32>
    %c0_3 = arith.constant 0 : index
    %c0_4 = arith.constant 0 : index
    %4 = vector.load %arg2[%c0_3, %c0_4] : memref<1x512xf32, #tpu.memory_space<vmem>>, vector<1x512xf32>
    %5 = vector.broadcast %4 : vector<1x512xf32> to vector<32x512xf32>
    %6 = arith.addf %3, %5 : vector<32x512xf32>
    %c0_5 = arith.constant 0 : index
    %c0_6 = arith.constant 0 : index
    %7 = vector.load %arg3[%c0_5, %c0_6] : memref<32x512xf32, #tpu.memory_space<vmem>>, vector<32x512xf32>
    tpu.vector_store %arg3[%c0_5, %c0_6], %6 {strides = array<i32>} : memref<32x512xf32, #tpu.memory_space<vmem>>, vector<32x512xf32>,
    return
  }
}

</mosaic_0001>

<llo_original>
// kernel: tpu_custom_call.1
$region0: #{tpu_custom_call.1}
  #allocation0 [shape = 'u32[]', space=smem, size = 0x4, offset = 0x4, fixed_abs, tag = 'smem constant byte address 0x4 - core index']
  #allocation1 [shape = 'u32[144,128]{1,0:T(1,128)}', space=vmem, size = 0x12000, scoped, tag = 'internal scratch']
  %s0 = inlined_call_operand.vmem [shape: f32[32,4], index: 0, kind: input, shape index: {}]
  %s1 = inlined_call_operand.vmem [shape: bf16[4,512], index: 1, kind: input, shape index: {}]
  %s2 = inlined_call_operand.vmem [shape: f32[1,512], index: 2, kind: input, shape index: {}]
  %s3 = inlined_call_operand.hbm [shape: f32[32,512], index: 3, kind: output, shape index: {}]
  %s4 = sld [smem:[#allocation0]]
  $region22: #{tpu_custom_call.1} parent=0
    _
  %s6 = ssub.s32 1, %s4
  %s7 = scalar_select 0, %s6, %s4
  $region1: #{tpu_custom_call.1} parent=0
    #allocation2 [shape = 'u8[65536]{0}', space=vmem, size = 0x10000, scoped, tag = 'output window, operand 0, single buffered']
    #allocation3 [shape = 's32[1]{0}', space=sflag, size = 0x4, scoped, tag = 'scoped memory for tpu_custom_call.1']
    %8 = vsyncpa [#allocation3], 0
    // Predicated region
    $region2: #{tpu_custom_call.1} parent=1 // pred_check
      _
    $region3: #{tpu_custom_call.1} parent=1 // pred_check_branch
      %10 = sbr.rel (0) target = $region5
    $region4: #{tpu_custom_call.1} parent=1 // pred_region
      _
    $region5: #{tpu_custom_call.1} parent=1 // pred_fallthru
      _
    // Predicated region
    $region6: #{tpu_custom_call.1} parent=1 // pred_check
      _
    $region7: #{tpu_custom_call.1} parent=1 // pred_check_branch
      %12 = sbr.rel (0) target = $region9
    $region8: #{tpu_custom_call.1} parent=1 // pred_region
      _
    $region9: #{tpu_custom_call.1} parent=1 // pred_fallthru
      _
    // Predicated region
    $region10: #{tpu_custom_call.1} parent=1 // pred_check
      _
    $region11: #{tpu_custom_call.1} parent=1 // pred_check_branch
      %14 = sbr.rel (0) target = $region13
    $region12: #{tpu_custom_call.1} parent=1 // pred_region
      _
    $region13: #{tpu_custom_call.1} parent=1 // pred_fallthru
      _
    %v16 = vld [vmem:[%s0] sm:$0xff]
    %v17 = vld [vmem:[%s0 + $0x8] sm:$0xff]
    %v18 = vld [vmem:[%s0 + $0x10] sm:$0xff]
    %v19 = vld [vmem:[%s0 + $0x18] sm:$0xff]
    %v20 = vpack.c.bf16 %v17, %v16
    %v21 = vpack.c.bf16 %v19, %v18
    %v22 = vld [vmem:[%s1] sm:$0xff]
    %v23 = vld [vmem:[%s2] sm:$0xf]
    %v25 = vlaneseq
    %v26 = vshrl.u32 %v25, 7
    %v27 = vsub.s32 0, %v26
    %v28 = vrot.slane %v23, %v27
    %v29 = vlaneseq
    %v30 = vshrl.u32 %v29, 7
    %v31 = vsub.s32 1, %v30
    %v32 = vrot.slane %v23, %v31
    %v33 = vlaneseq
    %v34 = vshrl.u32 %v33, 7
    %v35 = vsub.s32 2, %v34
    %v36 = vrot.slane %v23, %v35
    %v37 = vlaneseq
    %v38 = vshrl.u32 %v37, 7
    %v39 = vsub.s32 3, %v38
    %v40 = vrot.slane %v23, %v39
    %v46 = vcombine.high %v22, %v22
    %v48 = vunpack.c.l.s4 1983009808
    %v49 = vunpack.c.0.s8 %v48
    %v50 = vlaneseq
    %v51 = vshrl.u32 %v50, 7
    %v52 = vsub.s32 %v49, %v51
    %v53 = vrot.slane %v22, %v52
    %v55 = vunpack.c.l.s4 1983009808
    %v56 = vunpack.c.0.s8 %v55
    %v57 = vlaneseq
    %v58 = vshrl.u32 %v57, 7
    %v59 = vsub.s32 %v56, %v58
    %v60 = vrot.slane %v46, %v59
    %v61 = vcombine.high %v53, %v53
    %v62 = vcombine.high %v60, %v60
    %vm63 = vcmask 31744
    %v65 = vsel %vm63, %v20, 0
    %v68 = vsel %vm63, %v21, 0
    %vm70 = vcmask 1041408
    %v72 = vsel %vm70, %v53, 0
    %v75 = vsel %vm70, %v61, 0
    %v78 = vsel %vm70, %v60, 0
    %v81 = vsel %vm70, %v62, 0
    %83 = vmatprep.subr.bf16.mxu0 %v75
    %84 = vmatpush1.bf16.msra.mxu0 %v72
    %85 = vmatprep.subr.bf16.mxu0 0
    %86 = vmatpush1.bf16.msra.mxu0 0
    %87 = vmatprep.subr.bf16.mxu0 0
    %88 = vmatpush1.bf16.msra.mxu0 0
    %89 = vmatprep.subr.bf16.mxu0 0
    %90 = vmatpush1.bf16.msra.mxu0 0
    %91 = vmatprep.subr.bf16.mxu0 0
    %92 = vmatpush1.bf16.msra.mxu0 0
    %93 = vmatprep.subr.bf16.mxu0 0
    %94 = vmatpush1.bf16.msra.mxu0 0
    %95 = vmatprep.subr.bf16.mxu0 0
    %96 = vmatpush1.bf16.msra.mxu0 0
    %97 = vmatprep.subr.bf16.mxu0 0
    %98 = vmatpush1.bf16.msra.mxu0 0
    %99 = vmatprep.subr.bf16.mxu0 0
    %100 = vmatpush1.bf16.msra.mxu0 0
    %101 = vmatprep.subr.bf16.mxu0 0
    %102 = vmatpush1.bf16.msra.mxu0 0
    %103 = vmatprep.subr.bf16.mxu0 0
    %104 = vmatpush1.bf16.msra.mxu0 0
    %105 = vmatprep.subr.bf16.mxu0 0
    %106 = vmatpush1.bf16.msra.mxu0 0
    %107 = vmatprep.subr.bf16.mxu0 0
    %108 = vmatpush1.bf16.msra.mxu0 0
    %109 = vmatprep.subr.bf16.mxu0 0
    %110 = vmatpush1.bf16.msra.mxu0 0
    %111 = vmatprep.subr.bf16.mxu0 0
    %112 = vmatpush1.bf16.msra.mxu0 0
    %113 = vmatprep.subr.bf16.mxu0 0
    %114 = vmatpush1.bf16.msra.mxu0 0
    %115 = vmatprep.mubr.bf16.mxu0 0
    %116 = vmatmul.mubr.bf16.gmra.mrb[0].mxu0 %v65
    %v117 = vpop.f32.mrb[0].mxu0
    %v118 = vadd.f32 %v28, %v117
    %v119 = vpop.f32.mrb[0].mxu0
    %v120 = vadd.f32 %v32, %v119
    %v121 = vpop.f32.mrb[0].mxu0
    %v122 = vadd.f32 %v28, %v121
    %v123 = vpop.f32.mrb[0].mxu0
    %v124 = vadd.f32 %v32, %v123
    %125 = vmatprep.mubr.bf16.mxu0 0
    %126 = vmatmul.mubr.bf16.gmra.mrb[0].mxu0 %v68
    %v127 = vpop.f32.mrb[0].mxu0
    %v128 = vadd.f32 %v28, %v127
    %v129 = vpop.f32.mrb[0].mxu0
    %v130 = vadd.f32 %v32, %v129
    %v131 = vpop.f32.mrb[0].mxu0
    %v132 = vadd.f32 %v28, %v131
    %v133 = vpop.f32.mrb[0].mxu0
    %v134 = vadd.f32 %v32, %v133
    %135 = vdwg.mxu0
    %136 = vmatprep.subr.bf16.mxu0 %v81
    %137 = vmatpush1.bf16.msra.mxu0 %v78
    %138 = vmatprep.subr.bf16.mxu0 0
    %139 = vmatpush1.bf16.msra.mxu0 0
    %140 = vmatprep.subr.bf16.mxu0 0
    %141 = vmatpush1.bf16.msra.mxu0 0
    %142 = vmatprep.subr.bf16.mxu0 0
    %143 = vmatpush1.bf16.msra.mxu0 0
    %144 = vmatprep.subr.bf16.mxu0 0
    %145 = vmatpush1.bf16.msra.mxu0 0
    %146 = vmatprep.subr.bf16.mxu0 0
    %147 = vmatpush1.bf16.msra.mxu0 0
    %148 = vmatprep.subr.bf16.mxu0 0
    %149 = vmatpush1.bf16.msra.mxu0 0
    %150 = vmatprep.subr.bf16.mxu0 0
    %151 = vmatpush1.bf16.msra.mxu0 0
    %152 = vmatprep.subr.bf16.mxu0 0
    %153 = vmatpush1.bf16.msra.mxu0 0
    %154 = vmatprep.subr.bf16.mxu0 0
    %155 = vmatpush1.bf16.msra.mxu0 0
    %156 = vmatprep.subr.bf16.mxu0 0
    %157 = vmatpush1.bf16.msra.mxu0 0
    %158 = vmatprep.subr.bf16.mxu0 0
    %159 = vmatpush1.bf16.msra.mxu0 0
    %160 = vmatprep.subr.bf16.mxu0 0
    %161 = vmatpush1.bf16.msra.mxu0 0
    %162 = vmatprep.subr.bf16.mxu0 0
    %163 = vmatpush1.bf16.msra.mxu0 0
    %164 = vmatprep.subr.bf16.mxu0 0
    %165 = vmatpush1.bf16.msra.mxu0 0
    %166 = vmatprep.subr.bf16.mxu0 0
    %167 = vmatpush1.bf16.msra.mxu0 0
    %168 = vmatprep.mubr.bf16.mxu0 0
    %169 = vmatmul.mubr.bf16.gmra.mrb[0].mxu0 %v65
    %v170 = vpop.f32.mrb[0].mxu0
    %v171 = vadd.f32 %v36, %v170
    %v172 = vpop.f32.mrb[0].mxu0
    %v173 = vadd.f32 %v40, %v172
    %v174 = vpop.f32.mrb[0].mxu0
    %v175 = vadd.f32 %v36, %v174
    %v176 = vpop.f32.mrb[0].mxu0
    %v177 = vadd.f32 %v40, %v176
    %178 = vmatprep.mubr.bf16.mxu0 0
    %179 = vmatmul.mubr.bf16.gmra.mrb[0].mxu0 %v68
    %v180 = vpop.f32.mrb[0].mxu0
    %v181 = vadd.f32 %v36, %v180
    %v182 = vpop.f32.mrb[0].mxu0
    %v183 = vadd.f32 %v40, %v182
    %v184 = vpop.f32.mrb[0].mxu0
    %v185 = vadd.f32 %v36, %v184
    %v186 = vpop.f32.mrb[0].mxu0
    %v187 = vadd.f32 %v40, %v186
    %188 = vdwg.mxu0
    %189 = vst [vmem:[#allocation2] sm:$0xff] %v118
    %190 = vst [vmem:[#allocation2 + $0x8] sm:$0xff] %v120
    %191 = vst [vmem:[#allocation2 + $0x10] sm:$0xff] %v171
    %192 = vst [vmem:[#allocation2 + $0x18] sm:$0xff] %v173
    %193 = vst [vmem:[#allocation2 + $0x20] sm:$0xff] %v122
    %194 = vst [vmem:[#allocation2 + $0x28] sm:$0xff] %v124
    %195 = vst [vmem:[#allocation2 + $0x30] sm:$0xff] %v175
    %196 = vst [vmem:[#allocation2 + $0x38] sm:$0xff] %v177
    %197 = vst [vmem:[#allocation2 + $0x40] sm:$0xff] %v128
    %198 = vst [vmem:[#allocation2 + $0x48] sm:$0xff] %v130
    %199 = vst [vmem:[#allocation2 + $0x50] sm:$0xff] %v181
    %200 = vst [vmem:[#allocation2 + $0x58] sm:$0xff] %v183
    %201 = vst [vmem:[#allocation2 + $0x60] sm:$0xff] %v132
    %202 = vst [vmem:[#allocation2 + $0x68] sm:$0xff] %v134
    %203 = vst [vmem:[#allocation2 + $0x70] sm:$0xff] %v185
    %204 = vst [vmem:[#allocation2 + $0x78] sm:$0xff] %v187
    // Predicated region
    $region14: #{tpu_custom_call.1} parent=1 // pred_check
      _
    $region15: #{tpu_custom_call.1} parent=1 // pred_check_branch
      %206 = sbr.rel (0) target = $region17
    $region16: #{tpu_custom_call.1} parent=1 // pred_region
      %s208 = ssub.s32 2048, 2048
      %209 = vsyncadd [#allocation3], %s208
      %s210 = sshll.u32 [#allocation2], 4
      %s211 = int_to_ptr.vmem [resolvable:$true] %s210
      %216 = dma.vmem_to_hbm [thread:$0]  %s211, 2048, %s3, [#allocation3], 512, 512, 32
    $region17: #{tpu_custom_call.1} parent=1 // pred_fallthru
      _
    // Predicated region
    $region18: #{tpu_custom_call.1} parent=1 // pred_check
      _
    $region19: #{tpu_custom_call.1} parent=1 // pred_check_branch
      %218 = sbr.rel (0) target = $region21
    $region20: #{tpu_custom_call.1} parent=1 // pred_region
      %219 = dma.done [#allocation3], 2048
    $region21: #{tpu_custom_call.1} parent=1 // pred_fallthru
      _
    %220 = vsyncpa [#allocation3], 1

</llo_original>
